<compile_context>
chip_gen: v7x
topology: tpu7x:2x2x1
jax: 0.10.0
libtpu: 0.0.40
codegen_flags: <defaults>
</compile_context>

<pallas_src>
import functools

import jax
import jax.numpy as jnp
from jax import lax
from jax.experimental import pallas as pl
from jax.experimental.pallas import tpu as pltpu

_EPS = 1e-12  # matches torch.nn.functional.normalize


# ----------------------------------------------------------------------------
# Kernel: per-HW-tile unnormalized partial Gram of a = mean_c(f^2).
#   grid = (hw_tile ["parallel"], c_tile ["arbitrary", innermost reduction])
#   out[h] = a_h @ a_h.T   with a_h = mean_c(f[:, :, tile_h]^2)     -> (B, B)
#   sum_h out[h] == a @ a.T for the full map (zero-padded lanes contribute 0).
# ----------------------------------------------------------------------------
def _partial_gram_kernel(f_ref, out_ref, a_acc, *, inv_c):
    c = pl.program_id(1)
    last_c = pl.num_programs(1) - 1

    # Channel-partial sum of f^2 (f may be bf16; accumulate in f32).
    # Sublane (XLU) reduce: DMA-hidden for this HBM-bound kernel; switch to a
    # ones-vector MXU dot only if a bundle dump ever shows it binding.
    f = f_ref[...].astype(jnp.float32)            # (B, c_t, hw_t)
    part = jnp.sum(f * f, axis=1)                 # (B, hw_t)

    @pl.when(c == 0)
    def _():
        a_acc[...] = part

    @pl.when(c != 0)
    def _():
        a_acc[...] += part

    # End of the channel reduction for this HW tile: emit its partial Gram.
    @pl.when(c == last_c)
    def _():
        a = a_acc[...] * inv_c                    # mean over (original) channels
        out_ref[0] = lax.dot_general(
            a, a, (((1,), (1,)), ((), ())),
            precision=jax.lax.Precision.HIGHEST,
            preferred_element_type=jnp.float32)


# ----------------------------------------------------------------------------
# Tile selection
# ----------------------------------------------------------------------------
def _round_up(x, m):
    return -(-x // m) * m


def _largest_aligned_divisor(dim, unit, cap):
    """Largest multiple of `unit` dividing `dim` that is <= cap (0 if none)."""
    t = (min(cap, dim) // unit) * unit
    while t >= unit:
        if dim % t == 0:
            return t
        t -= unit
    return 0


def _choose_tiles(B, C, HW, itemsize, sub_unit, budget):
    """Pick (c_t, hw_t).  Tiles are either the full dim or (sub_unit, 128)-
    aligned; the channel tile is shrunk first and each DMA row keeps >= ~2 KiB
    contiguous."""
    if B * C * HW * itemsize <= budget:
        return C, HW                                   # single block, no tiling
    row = B * itemsize
    hw_floor = max(128, 2048 // itemsize)              # >= ~2 KiB per strided-DMA row
    hw_full = _round_up(HW, 128)
    c_min = sub_unit if C % sub_unit == 0 else C

    # Lane tile: as large as the budget allows at the minimal channel tile,
    # never below the floor; prefer a divisor of the lane-padded extent so any
    # zero-padding (a semantic no-op) stays minimal.
    hw_cap = max((budget // (row * c_min)) // 128 * 128, min(hw_floor, hw_full))
    hw_cap = min(hw_cap, hw_full)
    hw_t = _largest_aligned_divisor(hw_full, 128, hw_cap)
    if hw_t < min(hw_floor, hw_full):
        hw_t = hw_cap
    if hw_t >= HW:
        hw_t = HW                                      # spans whole extent: no padding

    # Channel tile: largest aligned divisor of C fitting the remaining budget.
    if C % sub_unit == 0:
        c_cap = max(budget // (row * hw_t), sub_unit)
        c_t = _largest_aligned_divisor(C, sub_unit, c_cap) or sub_unit
    else:
        # TODO(synk): zero-pad C (also a no-op under the 1/C mean) if an
        # unaligned channel count ever makes this block overflow VMEM.
        c_t = C
    return c_t, hw_t


def _vmem_capacity_bytes():
    try:
        cap = int(pltpu.get_tpu_info().vmem_capacity_bytes)
        if cap > 0:
            return cap
    except Exception:            # query unavailable (e.g. interpret mode)
        pass
    return 64 * 1024 * 1024      # conservative: v7x per-TensorCore VMEM


# ----------------------------------------------------------------------------
# Per-layer streaming pallas_call
# ----------------------------------------------------------------------------
def _partial_grams(f, *, block_budget_bytes=None):
    """f: (B, C, HW), any float dtype.  Returns (n_hw_tiles, B, B) float32
    partial Grams whose sum equals a @ a.T with a = mean_c(f^2)."""
    B, C, HW = f.shape
    itemsize = jnp.dtype(f.dtype).itemsize
    sub_unit = {4: 8, 2: 16, 1: 32}.get(itemsize, 8)   # packed-sublane unit

    vmem_allow = (_vmem_capacity_bytes() * 3) // 4     # ~25% headroom
    budget = block_budget_bytes
    if budget is None:
        # ~8 MiB blocks on 64 MiB-VMEM parts (v7x), ~16 MiB on 128 MiB parts.
        budget = int(min(32 << 20, max(8 << 20, vmem_allow // 6)))

    c_t, hw_t = _choose_tiles(B, C, HW, itemsize, sub_unit, budget)

    hw_pad = HW if hw_t == HW else _round_up(HW, hw_t)
    if hw_pad != HW:
        # Zero lanes contribute 0 to sum_c(f^2) and to the Gram: semantic no-op.
        f = jnp.pad(f, ((0, 0), (0, 0), (0, hw_pad - HW)))
    n_hw = hw_pad // hw_t
    n_c = C // c_t                                     # c_t divides C (or equals it)

    # VMEM: double-buffered input block + a_acc + (tiny) out block + slack,
    # tied to the chosen tiles and capped generation-aware.
    est = 2 * B * c_t * hw_t * itemsize + B * hw_t * 4 + 2 * B * B * 4 + (1 << 20)
    vmem_limit = max(32 << 20, est + est // 2)
    vmem_limit = int(min(vmem_limit, max(vmem_allow, est)))

    kernel = functools.partial(_partial_gram_kernel, inv_c=1.0 / C)
    return pl.pallas_call(
        kernel,
        out_shape=jax.ShapeDtypeStruct((n_hw, B, B), jnp.float32),
        grid_spec=pltpu.PrefetchScalarGridSpec(
            num_scalar_prefetch=0,
            grid=(n_hw, n_c),
            # NOTE: if a v7x trace ever shows exposed DMA at ~1 µs steps, add
            # pipeline_mode=pl.Buffered(3) here (one extra block of VMEM).
            in_specs=[pl.BlockSpec((B, c_t, hw_t), lambda h, c: (0, c, h))],
            out_specs=pl.BlockSpec((1, B, B), lambda h, c: (h, 0, 0)),
            scratch_shapes=[pltpu.VMEM((B, hw_t), jnp.float32)],   # a_acc
        ),
        compiler_params=pltpu.CompilerParams(
            # HW tiles are independent partial Grams -> "parallel" lets both
            # v7x TensorCores stream HBM; the C reduction stays innermost.
            dimension_semantics=("parallel", "arbitrary"),
            vmem_limit_bytes=vmem_limit,
        ),
    )(f)


def sim_matrix(f, *, block_budget_bytes=None, eps=_EPS):
    """Pallas-backed HighAttenPreserving.get_sim_matrix for an NCHW map."""
    B, C = f.shape[0], f.shape[1]
    hw = 1
    for d in f.shape[2:]:
        hw *= d
    grams = _partial_grams(f.reshape(B, C, hw), block_budget_bytes=block_budget_bytes)
    g = jnp.sum(grams, axis=0)                          # a @ a.T, a = mean_c(f^2)
    # F.normalize(a, dim=1): gram(a / d) = g / outer(d, d), d_i = max(||a_i||, eps),
    # and ||a_i||^2 == g_ii.  (The module's second row-normalize of `a` is a
    # numerical no-op — rows are already unit — and is intentionally dropped.)
    inv_d = lax.rsqrt(jnp.maximum(jnp.diagonal(g), eps * eps))
    m = g * inv_d[:, None] * inv_d[None, :]
    # F.normalize(mtx, dim=1)
    rn = jnp.sum(m * m, axis=1, keepdims=True)
    return m * lax.rsqrt(jnp.maximum(rn, eps * eps))


# ----------------------------------------------------------------------------
# Forward pass (module has no learnable parameters)
# ----------------------------------------------------------------------------
def high_atten_preserving(s_g, t_g, *, block_budget_bytes=None):
    # One streaming pallas_call per layer — no jnp.stack copy of the feature
    # maps; only the tiny (B, B) similarity matrices get stacked.
    s_mtx = jnp.stack([sim_matrix(f, block_budget_bytes=block_budget_bytes) for f in s_g])
    t_mtx = jnp.stack([sim_matrix(f, block_budget_bytes=block_budget_bytes) for f in t_g])
    # Pairwise MSE stays in plain JAX (a few KiB; a pallas_call would be pure
    # launch overhead).  == (s - t).pow(2).view(s_nl, -1).mean(1).mean(0).
    d = s_mtx[:, None, :, :] - t_mtx[None, :, :, :]
    return jnp.mean(jnp.square(d))


# ----------------------------------------------------------------------------
# Pure-JAX reference (faithful to the PyTorch module, for correctness checks)
# ----------------------------------------------------------------------------
def _ref_sim(f):
    B = f.shape[0]
    a = jnp.mean(jnp.asarray(f, jnp.float32) ** 2, axis=1).reshape(B, -1)
    a = a / jnp.maximum(jnp.linalg.norm(a, axis=1, keepdims=True), _EPS)
    a = a / jnp.maximum(jnp.linalg.norm(a, axis=1, keepdims=True), _EPS)
    m = jnp.matmul(a, a.T, precision=jax.lax.Precision.HIGHEST)
    return m / jnp.maximum(jnp.linalg.norm(m, axis=1, keepdims=True), _EPS)


def _ref_loss(s_g, t_g):
    s = jnp.stack([_ref_sim(f) for f in s_g])
    t = jnp.stack([_ref_sim(f) for f in t_g])
    d = s[:, None] - t[None, :]
    return jnp.mean(d ** 2)


if __name__ == "__main__":
    key = jax.random.PRNGKey(0)
    ks = jax.random.split(key, 8)

    # NCHW feature maps: batch matches across layers; C / spatial may differ.
    # Students f32, teachers bf16 (exercises native-dtype streaming).
    s_shapes = [(4, 16, 16, 16), (4, 16, 16, 16), (4, 8, 32, 32), (4, 8, 36, 36)]
    t_shapes = [(4, 32, 16, 16), (4, 8, 8, 8), (4, 4, 10, 10)]
    s_g = [jax.random.normal(ks[i], sh, jnp.float32) for i, sh in enumerate(s_shapes)]
    t_g = [jax.random.normal(ks[4 + i], sh, jnp.float32).astype(jnp.bfloat16)
           for i, sh in enumerate(t_shapes)]

    ref = jax.block_until_ready(_ref_loss(s_g, t_g))

    # 1) Default (generation-aware) tiling: single block per layer at toy sizes.
    loss = jax.block_until_ready(high_atten_preserving(s_g, t_g))
    assert jnp.isfinite(loss)
    assert jnp.allclose(loss, ref, atol=1e-4, rtol=1e-4), (loss, ref)

    # 2) Tiny forced budget: exercises the C-accumulation grid, the parallel
    #    HW-tile partial-Gram path, and the zero lane padding.
    loss_tiled = jax.block_until_ready(
        high_atten_preserving(s_g, t_g, block_budget_bytes=8 * 1024))
    assert jnp.allclose(loss_tiled, ref, atol=1e-4, rtol=1e-4), (loss_tiled, ref)

    print("KERNEL_OK")
</pallas_src>

<mosaic_0001>
module attributes {stable_mosaic.version = 11 : i64} {
  func.func @_partial_gram_kernel(%arg0: i32, %arg1: i32, %arg2: memref<4x16x256xf32, #tpu.memory_space<vmem>>, %arg3: memref<1x4x4xf32, #tpu.memory_space<vmem>>, %arg4: memref<4x256xf32, #tpu.memory_space<vmem>>) attributes {dimension_semantics = [#tpu.dimension_semantics<parallel>, #tpu.dimension_semantics<arbitrary>], iteration_bounds = array<i64: 1, 1>, scalar_prefetch = 0 : i64, scratch_operands = 1 : i64, tpu.core_type = #tpu.core_type<tc>, window_params = [{transform_indices = @transform_0, window_bounds = array<i64: 4, 16, 256>}, {transform_indices = @transform_1, window_bounds = array<i64: 1, 4, 4>}]} {
    %c0 = arith.constant 0 : index
    %c0_0 = arith.constant 0 : index
    %c0_1 = arith.constant 0 : index
    %0 = vector.load %arg2[%c0, %c0_0, %c0_1] : memref<4x16x256xf32, #tpu.memory_space<vmem>>, vector<4x16x256xf32>
    %1 = arith.mulf %0, %0 : vector<4x16x256xf32>
    %cst = arith.constant dense<0.000000e+00> : vector<4x256xf32>
    %2 = vector.multi_reduction <add>, %1, %cst [1] : vector<4x16x256xf32> to vector<4x256xf32>
    %c0_i32 = arith.constant 0 : i32
    %3 = arith.cmpi eq, %arg1, %c0_i32 : i32
    %4 = arith.extui %3 : i1 to i32
    %c0_i32_2 = arith.constant 0 : i32
    %5 = arith.cmpi ne, %4, %c0_i32_2 : i32
    scf.if %5 {
      %c0_7 = arith.constant 0 : index
      %c0_8 = arith.constant 0 : index
      %12 = vector.load %arg4[%c0_7, %c0_8] : memref<4x256xf32, #tpu.memory_space<vmem>>, vector<4x256xf32>
      tpu.vector_store %arg4[%c0_7, %c0_8], %2 {strides = array<i32>} : memref<4x256xf32, #tpu.memory_space<vmem>>, vector<4x256xf32>,
    } else {
    }
    %c0_i32_3 = arith.constant 0 : i32
    %6 = arith.cmpi ne, %arg1, %c0_i32_3 : i32
    %7 = arith.extui %6 : i1 to i32
    %c0_i32_4 = arith.constant 0 : i32
    %8 = arith.cmpi ne, %7, %c0_i32_4 : i32
    scf.if %8 {
      %c0_7 = arith.constant 0 : index
      %c0_8 = arith.constant 0 : index
      %12 = vector.load %arg4[%c0_7, %c0_8] : memref<4x256xf32, #tpu.memory_space<vmem>>, vector<4x256xf32>
      %13 = arith.addf %12, %2 : vector<4x256xf32>
      %c0_9 = arith.constant 0 : index
      %c0_10 = arith.constant 0 : index
      %14 = vector.load %arg4[%c0_9, %c0_10] : memref<4x256xf32, #tpu.memory_space<vmem>>, vector<4x256xf32>
      tpu.vector_store %arg4[%c0_9, %c0_10], %13 {strides = array<i32>} : memref<4x256xf32, #tpu.memory_space<vmem>>, vector<4x256xf32>,
    } else {
    }
    %c0_i32_5 = arith.constant 0 : i32
    %9 = arith.cmpi eq, %arg1, %c0_i32_5 : i32
    %10 = arith.extui %9 : i1 to i32
    %c0_i32_6 = arith.constant 0 : i32
    %11 = arith.cmpi ne, %10, %c0_i32_6 : i32
    scf.if %11 {
      %c0_7 = arith.constant 0 : index
      %c0_8 = arith.constant 0 : index
      %12 = vector.load %arg4[%c0_7, %c0_8] : memref<4x256xf32, #tpu.memory_space<vmem>>, vector<4x256xf32>
      %cst_9 = arith.constant 6.250000e-02 : f32
      %13 = vector.broadcast %cst_9 : f32 to vector<4x256xf32>
      %14 = arith.mulf %12, %13 : vector<4x256xf32>
      %cst_10 = arith.constant dense<0.000000e+00> : vector<4x4xf32>
      %15 = tpu.matmul %14, %14, %cst_10 {dimension_numbers = #tpu.dot_dimension_numbers<[1], [1], [0], [0], [0, 0, 1, 0], [], []>, precision = #tpu.contract_precision<fp32>} : vector<4x256xf32>, vector<4x256xf32>, vector<4x4xf32> -> vector<4x4xf32>
      %c0_11 = arith.constant 0 : index
      %c0_12 = arith.constant 0 : index
      %c0_13 = arith.constant 0 : index
      %16 = vector.load %arg3[%c0_11, %c0_12, %c0_13] : memref<1x4x4xf32, #tpu.memory_space<vmem>>, vector<1x4x4xf32>
      %17 = vector.shape_cast %16 : vector<1x4x4xf32> to vector<4x4xf32>
      %18 = vector.shape_cast %15 : vector<4x4xf32> to vector<1x4x4xf32>
      tpu.vector_store %arg3[%c0_11, %c0_12, %c0_13], %18 {strides = array<i32>} : memref<1x4x4xf32, #tpu.memory_space<vmem>>, vector<1x4x4xf32>,
    } else {
    }
    return
  }
  func.func @transform_0(%arg0: i32, %arg1: i32) -> (i32, i32, i32) {
    %c0_i32 = arith.constant 0 : i32
    %c0_i32_0 = arith.constant 0 : i32
    return %c0_i32, %arg1, %arg0 : i32, i32, i32
  }
  func.func @transform_1(%arg0: i32, %arg1: i32) -> (i32, i32, i32) {
    %c0_i32 = arith.constant 0 : i32
    %c0_i32_0 = arith.constant 0 : i32
    %c0_i32_1 = arith.constant 0 : i32
    return %arg0, %c0_i32, %c0_i32_0 : i32, i32, i32
  }
}

</mosaic_0001>

<llo_original>
// kernel: tpu_custom_call.1
$region0: #{tpu_custom_call.1}
  #allocation0 [shape = 'u32[]', space=smem, size = 0x4, offset = 0x4, fixed_abs, tag = 'smem constant byte address 0x4 - core index']
  #allocation1 [shape = 'u32[144,128]{1,0:T(1,128)}', space=vmem, size = 0x12000, scoped, tag = 'internal scratch']
  #allocation2 [shape = 'f32[4,256]{1,0:T(4,128)}', space=vmem, size = 0x1000, scoped, tag = 'scratch operand']
  %s0 = inlined_call_operand.hbm [shape: f32[4,16,256], index: 0, kind: input, shape index: {}]
  %s1 = inlined_call_operand.hbm [shape: f32[1,4,4], index: 1, kind: output, shape index: {}]
  %s2 = sld [smem:[#allocation0]]
  $region30: #{tpu_custom_call.1} parent=0
    _
  %s4 = ssub.s32 1, %s2
  %s5 = scalar_select 0, %s4, %s2
  $region1: #{tpu_custom_call.1} parent=0
    #allocation3 [shape = 'u8[65536]{0}', space=vmem, size = 0x10000, scoped, tag = 'input window, operand 0, single buffered']
    #allocation4 [shape = 's32[1]{0}', space=sflag, size = 0x4, scoped, tag = 'scoped memory for tpu_custom_call.1']
    #allocation5 [shape = 's32[1]{0}', space=sflag, size = 0x4, scoped, tag = 'scoped memory for tpu_custom_call.1']
    #allocation6 [shape = 'u8[2048]{0}', space=vmem, size = 0x800, scoped, tag = 'output window, operand 0, single buffered']
    %6 = vsyncpa [#allocation4], 0
    %7 = vsyncpa [#allocation5], 0
    // Predicated region
    $region2: #{tpu_custom_call.1} parent=1 // pred_check
      _
    $region3: #{tpu_custom_call.1} parent=1 // pred_check_branch
      %9 = sbr.rel (0) target = $region5
    $region4: #{tpu_custom_call.1} parent=1 // pred_region
      %s11 = ssub.s32 2048, 2048
      %12 = vsyncadd [#allocation4], %s11
      %s13 = sshll.u32 [#allocation3], 4
      %s14 = int_to_ptr.vmem [resolvable:$true] %s13
      %19 = dma.hbm_to_vmem [thread:$0]  %s0, 2048, %s14, [#allocation4], 256, 256, 16
    $region5: #{tpu_custom_call.1} parent=1 // pred_fallthru
      _
    // Predicated region
    $region6: #{tpu_custom_call.1} parent=1 // pred_check
      _
    $region7: #{tpu_custom_call.1} parent=1 // pred_check_branch
      %21 = sbr.rel (0) target = $region9
    $region8: #{tpu_custom_call.1} parent=1 // pred_region
      %22 = dma.done [#allocation4], 2048
    $region9: #{tpu_custom_call.1} parent=1 // pred_fallthru
      _
    %v23 = vld [vmem:[#allocation3] sm:$0xff]
    %v24 = vld [vmem:[#allocation3 + $0x8] sm:$0xff]
    %v25 = vld [vmem:[#allocation3 + $0x10] sm:$0xff]
    %v26 = vld [vmem:[#allocation3 + $0x18] sm:$0xff]
    %v27 = vld [vmem:[#allocation3 + $0x20] sm:$0xff]
    %v28 = vld [vmem:[#allocation3 + $0x28] sm:$0xff]
    %v29 = vld [vmem:[#allocation3 + $0x30] sm:$0xff]
    %v30 = vld [vmem:[#allocation3 + $0x38] sm:$0xff]
    %v31 = vld [vmem:[#allocation3 + $0x40] sm:$0xff]
    %v32 = vld [vmem:[#allocation3 + $0x48] sm:$0xff]
    %v33 = vld [vmem:[#allocation3 + $0x50] sm:$0xff]
    %v34 = vld [vmem:[#allocation3 + $0x58] sm:$0xff]
    %v35 = vld [vmem:[#allocation3 + $0x60] sm:$0xff]
    %v36 = vld [vmem:[#allocation3 + $0x68] sm:$0xff]
    %v37 = vld [vmem:[#allocation3 + $0x70] sm:$0xff]
    %v38 = vld [vmem:[#allocation3 + $0x78] sm:$0xff]
    %v39 = vmul.f32 %v23, %v23
    %v40 = vmul.f32 %v24, %v24
    %v41 = vmul.f32 %v25, %v25
    %v42 = vmul.f32 %v26, %v26
    %v43 = vmul.f32 %v27, %v27
    %v44 = vmul.f32 %v28, %v28
    %v45 = vmul.f32 %v29, %v29
    %v46 = vmul.f32 %v30, %v30
    %v47 = vmul.f32 %v31, %v31
    %v48 = vmul.f32 %v32, %v32
    %v49 = vmul.f32 %v33, %v33
    %v50 = vmul.f32 %v34, %v34
    %v51 = vmul.f32 %v35, %v35
    %v52 = vmul.f32 %v36, %v36
    %v53 = vmul.f32 %v37, %v37
    %v54 = vmul.f32 %v38, %v38
    %v55 = vadd.f32 %v39, %v41
    %v56 = vrot.slane %v55, 4
    %v57 = vadd.f32 %v55, %v56
    %v58 = vrot.slane %v57, 2
    %v59 = vadd.f32 %v57, %v58
    %v60 = vrot.slane %v59, 1
    %v61 = vadd.f32 %v59, %v60
    %v62 = vadd.f32 %v40, %v42
    %v63 = vrot.slane %v62, 4
    %v64 = vadd.f32 %v62, %v63
    %v65 = vrot.slane %v64, 2
    %v66 = vadd.f32 %v64, %v65
    %v67 = vrot.slane %v66, 1
    %v68 = vadd.f32 %v66, %v67
    %v69 = vadd.f32 %v43, %v45
    %v70 = vrot.slane %v69, 4
    %v71 = vadd.f32 %v69, %v70
    %v72 = vrot.slane %v71, 2
    %v73 = vadd.f32 %v71, %v72
    %v74 = vrot.slane %v73, 1
    %v75 = vadd.f32 %v73, %v74
    %v76 = vadd.f32 %v44, %v46
    %v77 = vrot.slane %v76, 4
    %v78 = vadd.f32 %v76, %v77
    %v79 = vrot.slane %v78, 2
    %v80 = vadd.f32 %v78, %v79
    %v81 = vrot.slane %v80, 1
    %v82 = vadd.f32 %v80, %v81
    %v83 = vadd.f32 %v47, %v49
    %v84 = vrot.slane %v83, 4
    %v85 = vadd.f32 %v83, %v84
    %v86 = vrot.slane %v85, 2
    %v87 = vadd.f32 %v85, %v86
    %v88 = vrot.slane %v87, 1
    %v89 = vadd.f32 %v87, %v88
    %v90 = vadd.f32 %v48, %v50
    %v91 = vrot.slane %v90, 4
    %v92 = vadd.f32 %v90, %v91
    %v93 = vrot.slane %v92, 2
    %v94 = vadd.f32 %v92, %v93
    %v95 = vrot.slane %v94, 1
    %v96 = vadd.f32 %v94, %v95
    %v97 = vadd.f32 %v51, %v53
    %v98 = vrot.slane %v97, 4
    %v99 = vadd.f32 %v97, %v98
    %v100 = vrot.slane %v99, 2
    %v101 = vadd.f32 %v99, %v100
    %v102 = vrot.slane %v101, 1
    %v103 = vadd.f32 %v101, %v102
    %v104 = vadd.f32 %v52, %v54
    %v105 = vrot.slane %v104, 4
    %v106 = vadd.f32 %v104, %v105
    %v107 = vrot.slane %v106, 2
    %v108 = vadd.f32 %v106, %v107
    %v109 = vrot.slane %v108, 1
    %v110 = vadd.f32 %v108, %v109
    %p111 = scmp.eq.s32.totalorder 0, 0
    // Predicated region
    $region10: #{tpu_custom_call.1} parent=1 // pred_check
      %p112 = pneg %p111
    $region11: #{tpu_custom_call.1} parent=1 // pred_check_branch
      %114 = sbr.rel (%p112) target = $region13
    $region12: #{tpu_custom_call.1} parent=1 // pred_region
      %v123 = vcombine.low %v61, %v68
      %v124 = vcombine.low %v75, %v82
      %v125 = vcombine.low %v89, %v96
      %v126 = vcombine.low %v103, %v110
      %v127 = vrot.slane %v124, 7
      %vm128 = vcmask 1041409
      %v129 = vsel %vm128, %v127, %v123
      %vm130 = vcmask 1045509
      %v131 = vsel %vm130, %v127, %v129
      %v132 = vrot.slane %v125, 6
      %vm133 = vcmask 1042434
      %v134 = vsel %vm133, %v132, %v131
      %vm135 = vcmask 1046534
      %v136 = vsel %vm135, %v132, %v134
      %v137 = vrot.slane %v126, 5
      %vm138 = vcmask 1043459
      %v139 = vsel %vm138, %v137, %v136
      %vm140 = vcmask 1047559
      %v141 = vsel %vm140, %v137, %v139
      %143 = vst [vmem:[#allocation2] sm:$0xff] %v141
    $region13: #{tpu_custom_call.1} parent=1 // pred_fallthru
      _
    %p144 = scmp.ne.s32.totalorder 0, 0
    // Predicated region
    $region14: #{tpu_custom_call.1} parent=1 // pred_check
      %p145 = pneg %p144
    $region15: #{tpu_custom_call.1} parent=1 // pred_check_branch
      %147 = sbr.rel (%p145) target = $region17
    $region16: #{tpu_custom_call.1} parent=1 // pred_region
      %v148 = vld [vmem:[#allocation2] sm:$0xff]
      %v157 = vcombine.low %v61, %v68
      %v158 = vcombine.low %v75, %v82
      %v159 = vcombine.low %v89, %v96
      %v160 = vcombine.low %v103, %v110
      %v161 = vrot.slane %v158, 7
      %vm162 = vcmask 1041409
      %v163 = vsel %vm162, %v161, %v157
      %vm164 = vcmask 1045509
      %v165 = vsel %vm164, %v161, %v163
      %v166 = vrot.slane %v159, 6
      %vm167 = vcmask 1042434
      %v168 = vsel %vm167, %v166, %v165
      %vm169 = vcmask 1046534
      %v170 = vsel %vm169, %v166, %v168
      %v171 = vrot.slane %v160, 5
      %vm172 = vcmask 1043459
      %v173 = vsel %vm172, %v171, %v170
      %vm174 = vcmask 1047559
      %v175 = vsel %vm174, %v171, %v173
      %v177 = vadd.f32 %v148, %v175
      %178 = vst [vmem:[#allocation2] sm:$0xff] %v177
    $region17: #{tpu_custom_call.1} parent=1 // pred_fallthru
      _
    // Predicated region
    $region18: #{tpu_custom_call.1} parent=1 // pred_check
      %p179 = pneg %p111
    $region19: #{tpu_custom_call.1} parent=1 // pred_check_branch
      %181 = sbr.rel (%p179) target = $region21
    $region20: #{tpu_custom_call.1} parent=1 // pred_region
      %v182 = vld [vmem:[#allocation2] sm:$0xff]
      %v183 = vmul.f32 %v182, 0.0625
      %v185 = vcombine.high %v183, %v183
      %v187 = vand.u32 %v185, 4294901760
      %188 = vmatprep.subr.mxu0 %v187
      %v189 = vand.u32 %v183, 4294901760
      %190 = vmatpush1.xpose.msra.mxu0 %v189
      %191 = vmatprep.subr.mxu0 0.0
      %192 = vmatpush1.xpose.msra.mxu0 0.0
      %193 = vmatprep.subr.mxu0 0.0
      %194 = vmatpush1.xpose.msra.mxu0 0.0
      %195 = vmatprep.subr.mxu0 0.0
      %196 = vmatpush1.xpose.msra.mxu0 0.0
      %197 = vmatprep.subr.mxu0 0.0
      %198 = vmatpush1.xpose.msra.mxu0 0.0
      %199 = vmatprep.subr.mxu0 0.0
      %200 = vmatpush1.xpose.msra.mxu0 0.0
      %201 = vmatprep.subr.mxu0 0.0
      %202 = vmatpush1.xpose.msra.mxu0 0.0
      %203 = vmatprep.subr.mxu0 0.0
      %204 = vmatpush1.xpose.msra.mxu0 0.0
      %205 = vmatprep.subr.mxu0 0.0
      %206 = vmatpush1.xpose.msra.mxu0 0.0
      %207 = vmatprep.subr.mxu0 0.0
      %208 = vmatpush1.xpose.msra.mxu0 0.0
      %209 = vmatprep.subr.mxu0 0.0
      %210 = vmatpush1.xpose.msra.mxu0 0.0
      %211 = vmatprep.subr.mxu0 0.0
      %212 = vmatpush1.xpose.msra.mxu0 0.0
      %213 = vmatprep.subr.mxu0 0.0
      %214 = vmatpush1.xpose.msra.mxu0 0.0
      %215 = vmatprep.subr.mxu0 0.0
      %216 = vmatpush1.xpose.msra.mxu0 0.0
      %217 = vmatprep.subr.mxu0 0.0
      %218 = vmatpush1.xpose.msra.mxu0 0.0
      %219 = vmatprep.subr.mxu0 0.0
      %220 = vmatpush1.xpose.msra.mxu0 0.0
      %221 = vmatprep.subr.mxu0 0.0
      %222 = vmatpush1.xpose.msra.mxu0 0.0
      %223 = vmatprep.subr.mxu0 0.0
      %224 = vmatpush1.xpose.msra.mxu0 0.0
      %225 = vmatprep.subr.mxu0 0.0
      %226 = vmatpush1.xpose.msra.mxu0 0.0
      %227 = vmatprep.subr.mxu0 0.0
      %228 = vmatpush1.xpose.msra.mxu0 0.0
      %229 = vmatprep.subr.mxu0 0.0
      %230 = vmatpush1.xpose.msra.mxu0 0.0
      %231 = vmatprep.subr.mxu0 0.0
      %232 = vmatpush1.xpose.msra.mxu0 0.0
      %233 = vmatprep.subr.mxu0 0.0
      %234 = vmatpush1.xpose.msra.mxu0 0.0
      %235 = vmatprep.subr.mxu0 0.0
      %236 = vmatpush1.xpose.msra.mxu0 0.0
      %237 = vmatprep.subr.mxu0 0.0
      %238 = vmatpush1.xpose.msra.mxu0 0.0
      %239 = vmatprep.subr.mxu0 0.0
      %240 = vmatpush1.xpose.msra.mxu0 0.0
      %241 = vmatprep.subr.mxu0 0.0
      %242 = vmatpush1.xpose.msra.mxu0 0.0
      %243 = vmatprep.subr.mxu0 0.0
      %244 = vmatpush1.xpose.msra.mxu0 0.0
      %245 = vmatprep.subr.mxu0 0.0
      %246 = vmatpush1.xpose.msra.mxu0 0.0
      %247 = vmatprep.subr.mxu0 0.0
      %248 = vmatpush1.xpose.msra.mxu0 0.0
      %249 = vmatprep.subr.mxu0 0.0
      %250 = vmatpush1.xpose.msra.mxu0 0.0
      %251 = vmatprep.subr.mxu0 0.0
      %252 = vmatpush1.xpose.msra.mxu0 0.0
      %v253 = vand.u32 %v185, 4294901760
      %v254 = vsub.f32 %v185, %v253
      %v255 = vand.u32 %v254, 4294901760
      %v256 = vsub.f32 %v254, %v255
      %v257 = vand.u32 %v256, 4294901760
      %258 = vmatprep.mubr.f32.mxu0 %v257
      %v259 = vand.u32 %v183, 4294901760
      %v260 = vsub.f32 %v183, %v259
      %v261 = vand.u32 %v260, 4294901760
      %v262 = vsub.f32 %v260, %v261
      %v263 = vand.u32 %v262, 4294901760
      %264 = vmatmul.mubr.f32.gmra.mrb[0].mxu0 %v263
      %v265 = vpop.f32.mrb[0].mxu0
      %v266 = vadd.f32 0.0, %v265
      %v267 = vpop.f32.mrb[0].mxu0
      %268 = vdwg.mxu0
      %v269 = vand.u32 %v185, 4294901760
      %v270 = vsub.f32 %v185, %v269
      %v271 = vand.u32 %v270, 4294901760
      %v272 = vsub.f32 %v270, %v271
      %v273 = vand.u32 %v272, 4294901760
      %274 = vmatprep.subr.mxu0 %v273
      %v275 = vand.u32 %v183, 4294901760
      %v276 = vsub.f32 %v183, %v275
      %v277 = vand.u32 %v276, 4294901760
      %v278 = vsub.f32 %v276, %v277
      %v279 = vand.u32 %v278, 4294901760
      %280 = vmatpush1.xpose.msra.mxu0 %v279
      %281 = vmatprep.subr.mxu0 0.0
      %282 = vmatpush1.xpose.msra.mxu0 0.0
      %283 = vmatprep.subr.mxu0 0.0
      %284 = vmatpush1.xpose.msra.mxu0 0.0
      %285 = vmatprep.subr.mxu0 0.0
      %286 = vmatpush1.xpose.msra.mxu0 0.0
      %287 = vmatprep.subr.mxu0 0.0
      %288 = vmatpush1.xpose.msra.mxu0 0.0
      %289 = vmatprep.subr.mxu0 0.0
      %290 = vmatpush1.xpose.msra.mxu0 0.0
      %291 = vmatprep.subr.mxu0 0.0
      %292 = vmatpush1.xpose.msra.mxu0 0.0
      %293 = vmatprep.subr.mxu0 0.0
      %294 = vmatpush1.xpose.msra.mxu0 0.0
      %295 = vmatprep.subr.mxu0 0.0
      %296 = vmatpush1.xpose.msra.mxu0 0.0
      %297 = vmatprep.subr.mxu0 0.0
      %298 = vmatpush1.xpose.msra.mxu0 0.0
      %299 = vmatprep.subr.mxu0 0.0
      %300 = vmatpush1.xpose.msra.mxu0 0.0
      %301 = vmatprep.subr.mxu0 0.0
      %302 = vmatpush1.xpose.msra.mxu0 0.0
      %303 = vmatprep.subr.mxu0 0.0
      %304 = vmatpush1.xpose.msra.mxu0 0.0
      %305 = vmatprep.subr.mxu0 0.0
      %306 = vmatpush1.xpose.msra.mxu0 0.0
      %307 = vmatprep.subr.mxu0 0.0
      %308 = vmatpush1.xpose.msra.mxu0 0.0
      %309 = vmatprep.subr.mxu0 0.0
      %310 = vmatpush1.xpose.msra.mxu0 0.0
      %311 = vmatprep.subr.mxu0 0.0
      %312 = vmatpush1.xpose.msra.mxu0 0.0
      %313 = vmatprep.subr.mxu0 0.0
      %314 = vmatpush1.xpose.msra.mxu0 0.0
      %315 = vmatprep.subr.mxu0 0.0
      %316 = vmatpush1.xpose.msra.mxu0 0.0
      %317 = vmatprep.subr.mxu0 0.0
      %318 = vmatpush1.xpose.msra.mxu0 0.0
      %319 = vmatprep.subr.mxu0 0.0
      %320 = vmatpush1.xpose.msra.mxu0 0.0
      %321 = vmatprep.subr.mxu0 0.0
      %322 = vmatpush1.xpose.msra.mxu0 0.0
      %323 = vmatprep.subr.mxu0 0.0
      %324 = vmatpush1.xpose.msra.mxu0 0.0
      %325 = vmatprep.subr.mxu0 0.0
      %326 = vmatpush1.xpose.msra.mxu0 0.0
      %327 = vmatprep.subr.mxu0 0.0
      %328 = vmatpush1.xpose.msra.mxu0 0.0
      %329 = vmatprep.subr.mxu0 0.0
      %330 = vmatpush1.xpose.msra.mxu0 0.0
      %331 = vmatprep.subr.mxu0 0.0
      %332 = vmatpush1.xpose.msra.mxu0 0.0
      %333 = vmatprep.subr.mxu0 0.0
      %334 = vmatpush1.xpose.msra.mxu0 0.0
      %335 = vmatprep.subr.mxu0 0.0
      %336 = vmatpush1.xpose.msra.mxu0 0.0
      %337 = vmatprep.subr.mxu0 0.0
      %338 = vmatpush1.xpose.msra.mxu0 0.0
      %339 = vmatprep.subr.mxu0 0.0
      %340 = vmatpush1.xpose.msra.mxu0 0.0
      %341 = vmatprep.subr.mxu0 0.0
      %342 = vmatpush1.xpose.msra.mxu0 0.0
      %v343 = vand.u32 %v185, 4294901760
      %344 = vmatprep.mubr.f32.mxu0 %v343
      %v345 = vand.u32 %v183, 4294901760
      %346 = vmatmul.mubr.f32.gmra.mrb[0].mxu0 %v345
      %v347 = vpop.f32.mrb[0].mxu0
      %v348 = vadd.f32 %v266, %v347
      %v349 = vpop.f32.mrb[0].mxu0
      %350 = vdwg.mxu0
      %v351 = vand.u32 %v185, 4294901760
      %v352 = vsub.f32 %v185, %v351
      %353 = vmatprep.subr.mxu0 %v352
      %v354 = vand.u32 %v183, 4294901760
      %v355 = vsub.f32 %v183, %v354
      %356 = vmatpush1.xpose.msra.mxu0 %v355
      %357 = vmatprep.subr.mxu0 0.0
      %358 = vmatpush1.xpose.msra.mxu0 0.0
      %359 = vmatprep.subr.mxu0 0.0
      %360 = vmatpush1.xpose.msra.mxu0 0.0
      %361 = vmatprep.subr.mxu0 0.0
      %362 = vmatpush1.xpose.msra.mxu0 0.0
      %363 = vmatprep.subr.mxu0 0.0
      %364 = vmatpush1.xpose.msra.mxu0 0.0
      %365 = vmatprep.subr.mxu0 0.0
      %366 = vmatpush1.xpose.msra.mxu0 0.0
      %367 = vmatprep.subr.mxu0 0.0
      %368 = vmatpush1.xpose.msra.mxu0 0.0
      %369 = vmatprep.subr.mxu0 0.0
      %370 = vmatpush1.xpose.msra.mxu0 0.0
      %371 = vmatprep.subr.mxu0 0.0
      %372 = vmatpush1.xpose.msra.mxu0 0.0
      %373 = vmatprep.subr.mxu0 0.0
      %374 = vmatpush1.xpose.msra.mxu0 0.0
      %375 = vmatprep.subr.mxu0 0.0
      %376 = vmatpush1.xpose.msra.mxu0 0.0
      %377 = vmatprep.subr.mxu0 0.0
      %378 = vmatpush1.xpose.msra.mxu0 0.0
      %379 = vmatprep.subr.mxu0 0.0
      %380 = vmatpush1.xpose.msra.mxu0 0.0
      %381 = vmatprep.subr.mxu0 0.0
      %382 = vmatpush1.xpose.msra.mxu0 0.0
      %383 = vmatprep.subr.mxu0 0.0
      %384 = vmatpush1.xpose.msra.mxu0 0.0
      %385 = vmatprep.subr.mxu0 0.0
      %386 = vmatpush1.xpose.msra.mxu0 0.0
      %387 = vmatprep.subr.mxu0 0.0
      %388 = vmatpush1.xpose.msra.mxu0 0.0
      %389 = vmatprep.subr.mxu0 0.0
      %390 = vmatpush1.xpose.msra.mxu0 0.0
      %391 = vmatprep.subr.mxu0 0.0
      %392 = vmatpush1.xpose.msra.mxu0 0.0
      %393 = vmatprep.subr.mxu0 0.0
      %394 = vmatpush1.xpose.msra.mxu0 0.0
      %395 = vmatprep.subr.mxu0 0.0
      %396 = vmatpush1.xpose.msra.mxu0 0.0
      %397 = vmatprep.subr.mxu0 0.0
      %398 = vmatpush1.xpose.msra.mxu0 0.0
      %399 = vmatprep.subr.mxu0 0.0
      %400 = vmatpush1.xpose.msra.mxu0 0.0
      %401 = vmatprep.subr.mxu0 0.0
      %402 = vmatpush1.xpose.msra.mxu0 0.0
      %403 = vmatprep.subr.mxu0 0.0
      %404 = vmatpush1.xpose.msra.mxu0 0.0
      %405 = vmatprep.subr.mxu0 0.0
      %406 = vmatpush1.xpose.msra.mxu0 0.0
      %407 = vmatprep.subr.mxu0 0.0
      %408 = vmatpush1.xpose.msra.mxu0 0.0
      %409 = vmatprep.subr.mxu0 0.0
      %410 = vmatpush1.xpose.msra.mxu0 0.0
      %411 = vmatprep.subr.mxu0 0.0
      %412 = vmatpush1.xpose.msra.mxu0 0.0
      %413 = vmatprep.subr.mxu0 0.0
      %414 = vmatpush1.xpose.msra.mxu0 0.0
      %415 = vmatprep.subr.mxu0 0.0
      %416 = vmatpush1.xpose.msra.mxu0 0.0
      %417 = vmatprep.subr.mxu0 0.0
      %418 = vmatpush1.xpose.msra.mxu0 0.0
      %v419 = vand.u32 %v185, 4294901760
      %v420 = vsub.f32 %v185, %v419
      %421 = vmatprep.mubr.f32.mxu0 %v420
      %v422 = vand.u32 %v183, 4294901760
      %v423 = vsub.f32 %v183, %v422
      %424 = vmatmul.mubr.f32.gmra.mrb[0].mxu0 %v423
      %v425 = vpop.f32.mrb[0].mxu0
      %v426 = vadd.f32 %v348, %v425
      %v427 = vpop.f32.mrb[0].mxu0
      %428 = vdwg.mxu0
      %v429 = vand.u32 %v185, 4294901760
      %430 = vmatprep.subr.mxu0 %v429
      %v431 = vand.u32 %v183, 4294901760
      %432 = vmatpush1.xpose.msra.mxu0 %v431
      %433 = vmatprep.subr.mxu0 0.0
      %434 = vmatpush1.xpose.msra.mxu0 0.0
      %435 = vmatprep.subr.mxu0 0.0
      %436 = vmatpush1.xpose.msra.mxu0 0.0
      %437 = vmatprep.subr.mxu0 0.0
      %438 = vmatpush1.xpose.msra.mxu0 0.0
      %439 = vmatprep.subr.mxu0 0.0
      %440 = vmatpush1.xpose.msra.mxu0 0.0
      %441 = vmatprep.subr.mxu0 0.0
      %442 = vmatpush1.xpose.msra.mxu0 0.0
      %443 = vmatprep.subr.mxu0 0.0
      %444 = vmatpush1.xpose.msra.mxu0 0.0
      %445 = vmatprep.subr.mxu0 0.0
      %446 = vmatpush1.xpose.msra.mxu0 0.0
      %447 = vmatprep.subr.mxu0 0.0
      %448 = vmatpush1.xpose.msra.mxu0 0.0
      %449 = vmatprep.subr.mxu0 0.0
      %450 = vmatpush1.xpose.msra.mxu0 0.0
      %451 = vmatprep.subr.mxu0 0.0
      %452 = vmatpush1.xpose.msra.mxu0 0.0
      %453 = vmatprep.subr.mxu0 0.0
      %454 = vmatpush1.xpose.msra.mxu0 0.0
      %455 = vmatprep.subr.mxu0 0.0
      %456 = vmatpush1.xpose.msra.mxu0 0.0
      %457 = vmatprep.subr.mxu0 0.0
      %458 = vmatpush1.xpose.msra.mxu0 0.0
      %459 = vmatprep.subr.mxu0 0.0
      %460 = vmatpush1.xpose.msra.mxu0 0.0
      %461 = vmatprep.subr.mxu0 0.0
      %462 = vmatpush1.xpose.msra.mxu0 0.0
      %463 = vmatprep.subr.mxu0 0.0
      %464 = vmatpush1.xpose.msra.mxu0 0.0
      %465 = vmatprep.subr.mxu0 0.0
      %466 = vmatpush1.xpose.msra.mxu0 0.0
      %467 = vmatprep.subr.mxu0 0.0
      %468 = vmatpush1.xpose.msra.mxu0 0.0
      %469 = vmatprep.subr.mxu0 0.0
      %470 = vmatpush1.xpose.msra.mxu0 0.0
      %471 = vmatprep.subr.mxu0 0.0
      %472 = vmatpush1.xpose.msra.mxu0 0.0
      %473 = vmatprep.subr.mxu0 0.0
      %474 = vmatpush1.xpose.msra.mxu0 0.0
      %475 = vmatprep.subr.mxu0 0.0
      %476 = vmatpush1.xpose.msra.mxu0 0.0
      %477 = vmatprep.subr.mxu0 0.0
      %478 = vmatpush1.xpose.msra.mxu0 0.0
      %479 = vmatprep.subr.mxu0 0.0
      %480 = vmatpush1.xpose.msra.mxu0 0.0
      %481 = vmatprep.subr.mxu0 0.0
      %482 = vmatpush1.xpose.msra.mxu0 0.0
      %483 = vmatprep.subr.mxu0 0.0
      %484 = vmatpush1.xpose.msra.mxu0 0.0
      %485 = vmatprep.subr.mxu0 0.0
      %486 = vmatpush1.xpose.msra.mxu0 0.0
      %487 = vmatprep.subr.mxu0 0.0
      %488 = vmatpush1.xpose.msra.mxu0 0.0
      %489 = vmatprep.subr.mxu0 0.0
      %490 = vmatpush1.xpose.msra.mxu0 0.0
      %491 = vmatprep.subr.mxu0 0.0
      %492 = vmatpush1.xpose.msra.mxu0 0.0
      %493 = vmatprep.subr.mxu0 0.0
      %494 = vmatpush1.xpose.msra.mxu0 0.0
      %v495 = vand.u32 %v185, 4294901760
      %v496 = vsub.f32 %v185, %v495
      %v497 = vand.u32 %v496, 4294901760
      %498 = vmatprep.mubr.f32.mxu0 %v497
      %v499 = vand.u32 %v183, 4294901760
      %v500 = vsub.f32 %v183, %v499
      %v501 = vand.u32 %v500, 4294901760
      %502 = vmatmul.mubr.f32.gmra.mrb[0].mxu0 %v501
      %v503 = vpop.f32.mrb[0].mxu0
      %v504 = vadd.f32 %v426, %v503
      %v505 = vpop.f32.mrb[0].mxu0
      %506 = vdwg.mxu0
      %v507 = vand.u32 %v185, 4294901760
      %v508 = vsub.f32 %v185, %v507
      %v509 = vand.u32 %v508, 4294901760
      %510 = vmatprep.subr.mxu0 %v509
      %v511 = vand.u32 %v183, 4294901760
      %v512 = vsub.f32 %v183, %v511
      %v513 = vand.u32 %v512, 4294901760
      %514 = vmatpush1.xpose.msra.mxu0 %v513
      %515 = vmatprep.subr.mxu0 0.0
      %516 = vmatpush1.xpose.msra.mxu0 0.0
      %517 = vmatprep.subr.mxu0 0.0
      %518 = vmatpush1.xpose.msra.mxu0 0.0
      %519 = vmatprep.subr.mxu0 0.0
      %520 = vmatpush1.xpose.msra.mxu0 0.0
      %521 = vmatprep.subr.mxu0 0.0
      %522 = vmatpush1.xpose.msra.mxu0 0.0
      %523 = vmatprep.subr.mxu0 0.0
      %524 = vmatpush1.xpose.msra.mxu0 0.0
      %525 = vmatprep.subr.mxu0 0.0
      %526 = vmatpush1.xpose.msra.mxu0 0.0
      %527 = vmatprep.subr.mxu0 0.0
      %528 = vmatpush1.xpose.msra.mxu0 0.0
      %529 = vmatprep.subr.mxu0 0.0
      %530 = vmatpush1.xpose.msra.mxu0 0.0
      %531 = vmatprep.subr.mxu0 0.0
      %532 = vmatpush1.xpose.msra.mxu0 0.0
      %533 = vmatprep.subr.mxu0 0.0
      %534 = vmatpush1.xpose.msra.mxu0 0.0
      %535 = vmatprep.subr.mxu0 0.0
      %536 = vmatpush1.xpose.msra.mxu0 0.0
      %537 = vmatprep.subr.mxu0 0.0
      %538 = vmatpush1.xpose.msra.mxu0 0.0
      %539 = vmatprep.subr.mxu0 0.0
      %540 = vmatpush1.xpose.msra.mxu0 0.0
      %541 = vmatprep.subr.mxu0 0.0
      %542 = vmatpush1.xpose.msra.mxu0 0.0
      %543 = vmatprep.subr.mxu0 0.0
      %544 = vmatpush1.xpose.msra.mxu0 0.0
      %545 = vmatprep.subr.mxu0 0.0
      %546 = vmatpush1.xpose.msra.mxu0 0.0
      %547 = vmatprep.subr.mxu0 0.0
      %548 = vmatpush1.xpose.msra.mxu0 0.0
      %549 = vmatprep.subr.mxu0 0.0
      %550 = vmatpush1.xpose.msra.mxu0 0.0
      %551 = vmatprep.subr.mxu0 0.0
      %552 = vmatpush1.xpose.msra.mxu0 0.0
      %553 = vmatprep.subr.mxu0 0.0
      %554 = vmatpush1.xpose.msra.mxu0 0.0
      %555 = vmatprep.subr.mxu0 0.0
      %556 = vmatpush1.xpose.msra.mxu0 0.0
      %557 = vmatprep.subr.mxu0 0.0
      %558 = vmatpush1.xpose.msra.mxu0 0.0
      %559 = vmatprep.subr.mxu0 0.0
      %560 = vmatpush1.xpose.msra.mxu0 0.0
      %561 = vmatprep.subr.mxu0 0.0
      %562 = vmatpush1.xpose.msra.mxu0 0.0
      %563 = vmatprep.subr.mxu0 0.0
      %564 = vmatpush1.xpose.msra.mxu0 0.0
      %565 = vmatprep.subr.mxu0 0.0
      %566 = vmatpush1.xpose.msra.mxu0 0.0
      %567 = vmatprep.subr.mxu0 0.0
      %568 = vmatpush1.xpose.msra.mxu0 0.0
      %569 = vmatprep.subr.mxu0 0.0
      %570 = vmatpush1.xpose.msra.mxu0 0.0
      %571 = vmatprep.subr.mxu0 0.0
      %572 = vmatpush1.xpose.msra.mxu0 0.0
      %573 = vmatprep.subr.mxu0 0.0
      %574 = vmatpush1.xpose.msra.mxu0 0.0
      %575 = vmatprep.subr.mxu0 0.0
      %576 = vmatpush1.xpose.msra.mxu0 0.0
      %v577 = vand.u32 %v185, 4294901760
      %578 = vmatprep.mubr.f32.mxu0 %v577
      %v579 = vand.u32 %v183, 4294901760
      %580 = vmatmul.mubr.f32.gmra.mrb[0].mxu0 %v579
      %v581 = vpop.f32.mrb[0].mxu0
      %v582 = vadd.f32 %v504, %v581
      %v583 = vpop.f32.mrb[0].mxu0
      %584 = vdwg.mxu0
      %v585 = vand.u32 %v185, 4294901760
      %586 = vmatprep.subr.mxu0 %v585
      %v587 = vand.u32 %v183, 4294901760
      %588 = vmatpush1.xpose.msra.mxu0 %v587
      %589 = vmatprep.subr.mxu0 0.0
      %590 = vmatpush1.xpose.msra.mxu0 0.0
      %591 = vmatprep.subr.mxu0 0.0
      %592 = vmatpush1.xpose.msra.mxu0 0.0
      %593 = vmatprep.subr.mxu0 0.0
      %594 = vmatpush1.xpose.msra.mxu0 0.0
      %595 = vmatprep.subr.mxu0 0.0
      %596 = vmatpush1.xpose.msra.mxu0 0.0
      %597 = vmatprep.subr.mxu0 0.0
      %598 = vmatpush1.xpose.msra.mxu0 0.0
      %599 = vmatprep.subr.mxu0 0.0
      %600 = vmatpush1.xpose.msra.mxu0 0.0
      %601 = vmatprep.subr.mxu0 0.0
      %602 = vmatpush1.xpose.msra.mxu0 0.0
      %603 = vmatprep.subr.mxu0 0.0
      %604 = vmatpush1.xpose.msra.mxu0 0.0
      %605 = vmatprep.subr.mxu0 0.0
      %606 = vmatpush1.xpose.msra.mxu0 0.0
      %607 = vmatprep.subr.mxu0 0.0
      %608 = vmatpush1.xpose.msra.mxu0 0.0
      %609 = vmatprep.subr.mxu0 0.0
      %610 = vmatpush1.xpose.msra.mxu0 0.0
      %611 = vmatprep.subr.mxu0 0.0
      %612 = vmatpush1.xpose.msra.mxu0 0.0
      %613 = vmatprep.subr.mxu0 0.0
      %614 = vmatpush1.xpose.msra.mxu0 0.0
      %615 = vmatprep.subr.mxu0 0.0
      %616 = vmatpush1.xpose.msra.mxu0 0.0
      %617 = vmatprep.subr.mxu0 0.0
      %618 = vmatpush1.xpose.msra.mxu0 0.0
      %619 = vmatprep.subr.mxu0 0.0
      %620 = vmatpush1.xpose.msra.mxu0 0.0
      %621 = vmatprep.subr.mxu0 0.0
      %622 = vmatpush1.xpose.msra.mxu0 0.0
      %623 = vmatprep.subr.mxu0 0.0
      %624 = vmatpush1.xpose.msra.mxu0 0.0
      %625 = vmatprep.subr.mxu0 0.0
      %626 = vmatpush1.xpose.msra.mxu0 0.0
      %627 = vmatprep.subr.mxu0 0.0
      %628 = vmatpush1.xpose.msra.mxu0 0.0
      %629 = vmatprep.subr.mxu0 0.0
      %630 = vmatpush1.xpose.msra.mxu0 0.0
      %631 = vmatprep.subr.mxu0 0.0
      %632 = vmatpush1.xpose.msra.mxu0 0.0
      %633 = vmatprep.subr.mxu0 0.0
      %634 = vmatpush1.xpose.msra.mxu0 0.0
      %635 = vmatprep.subr.mxu0 0.0
      %636 = vmatpush1.xpose.msra.mxu0 0.0
      %637 = vmatprep.subr.mxu0 0.0
      %638 = vmatpush1.xpose.msra.mxu0 0.0
      %639 = vmatprep.subr.mxu0 0.0
      %640 = vmatpush1.xpose.msra.mxu0 0.0
      %641 = vmatprep.subr.mxu0 0.0
      %642 = vmatpush1.xpose.msra.mxu0 0.0
      %643 = vmatprep.subr.mxu0 0.0
      %644 = vmatpush1.xpose.msra.mxu0 0.0
      %645 = vmatprep.subr.mxu0 0.0
      %646 = vmatpush1.xpose.msra.mxu0 0.0
      %647 = vmatprep.subr.mxu0 0.0
      %648 = vmatpush1.xpose.msra.mxu0 0.0
      %649 = vmatprep.subr.mxu0 0.0
      %650 = vmatpush1.xpose.msra.mxu0 0.0
      %v651 = vand.u32 %v185, 4294901760
      %652 = vmatprep.mubr.f32.mxu0 %v651
      %v653 = vand.u32 %v183, 4294901760
      %654 = vmatmul.mubr.f32.gmra.mrb[0].mxu0 %v653
      %v655 = vpop.f32.mrb[0].mxu0
      %v656 = vadd.f32 %v582, %v655
      %v657 = vpop.f32.mrb[0].mxu0
      %658 = vdwg.mxu0
      %vm659 = vcmask 27648
      %660 = vst.msk [vmem:[#allocation6] sm:$0xf] %vm659, %v656
    $region21: #{tpu_custom_call.1} parent=1 // pred_fallthru
      _
    // Predicated region
    $region22: #{tpu_custom_call.1} parent=1 // pred_check
      _
    $region23: #{tpu_custom_call.1} parent=1 // pred_check_branch
      %662 = sbr.rel (0) target = $region25
    $region24: #{tpu_custom_call.1} parent=1 // pred_region
      %s664 = ssub.s32 64, 64
      %665 = vsyncadd [#allocation5], %s664
      %s667 = sshll.u32 [#allocation6], 4
      %s668 = int_to_ptr.vmem [resolvable:$true] %s667
      %670 = dma.vmem_to_hbm [thread:$0]  %s668, 64, %s1, [#allocation5]
    $region25: #{tpu_custom_call.1} parent=1 // pred_fallthru
      _
    // Predicated region
    $region26: #{tpu_custom_call.1} parent=1 // pred_check
      _
    $region27: #{tpu_custom_call.1} parent=1 // pred_check_branch
      %672 = sbr.rel (0) target = $region29
    $region28: #{tpu_custom_call.1} parent=1 // pred_region
      %673 = dma.done [#allocation5], 64
    $region29: #{tpu_custom_call.1} parent=1 // pred_fallthru
      _
    %674 = vsyncpa [#allocation4], 1
    %675 = vsyncpa [#allocation5], 1

</llo_original>
